<compile_context>
chip_gen: v5e
topology: v5e:2x2
jax: 0.10.0
libtpu: 0.0.40
codegen_flags: <defaults>
</compile_context>

<pallas_src>
import math

import jax
import jax.numpy as jnp
from jax.experimental import pallas as pl
from jax.experimental.pallas import tpu as pltpu


def make_nf_forward_kernel(n_layers: int, dim: int, dt: float):
    """Kernel for a flow with `n_layers` affine coupling layers (feature-major).

    Masks are pre-folded into the (fused) weights, so the kernel is just:
        h  = relu(W1f[l] @ x + b1f[l])
        st = W2f[l] @ h + b2f[l]          # rows [:dim] = m*s_raw, [dim:] = m*dt*t_raw
        s  = tanh(st[:dim]) * dt
        x  = (x + st[dim:]) * exp(s);  ldj += sum(s, axis=features)
    """

    def kernel(x_ref, w1_ref, b1_ref, w2_ref, b2_ref, xo_ref, ldj_ref):
        mxu_dt = w1_ref.dtype                              # f32 (or bf16 if requested)
        x = x_ref[...].astype(jnp.float32)                 # (dim, TB)
        ldj = jnp.zeros((1, x.shape[1]), jnp.float32)      # (1, TB) lane-dense

        for l in range(n_layers):                          # static unroll over layers
            # fused first layer of scale+translation nets (masking folded into W1):
            # (2H, dim) @ (dim, TB) -> (2H, TB), bias + ReLU on the slab
            h = jnp.dot(w1_ref[l], x.astype(mxu_dt),
                        preferred_element_type=jnp.float32) + b1_ref[l]
            h = jnp.maximum(h, 0.0)

            # fused block-diagonal second layer (mask / mask*dt folded into rows):
            # (2*dim, 2H) @ (2H, TB) -> (2*dim, TB)
            st = jnp.dot(w2_ref[l], h.astype(mxu_dt),
                         preferred_element_type=jnp.float32) + b2_ref[l]

            s = jnp.tanh(st[:dim]) * dt                    # (dim, TB); mask pre-folded
            t = st[dim:]                                   # (dim, TB); mask*dt pre-folded

            # log-det-jacobian: feature reduction over sublanes -> lane-dense (1,TB)
            ldj = ldj + jnp.sum(s, axis=0, keepdims=True)
            x = (x + t) * jnp.exp(s)

        xo_ref[...] = x.astype(xo_ref.dtype)
        ldj_ref[...] = ldj

    return kernel


def nf_forward_fm(x_fm, fused_params, dt, *, tb=2048):
    """Feature-major normalizing-flow forward pass in one Pallas kernel.

    x_fm:         (dim, B) float32   (feature-major; batch on lanes)
    fused_params: (W1f (L,2H,dim), b1f (L,2H,1), W2f (L,2dim,2H), b2f (L,2dim,1))
                  with masks / dt pre-folded (see fuse_params).
    Returns (x_out (dim, B), log_det_jac (B,)).
    """
    dim, B = x_fm.shape
    W1f, b1f, W2f, b2f = fused_params
    L, twoH = W1f.shape[0], W1f.shape[1]

    # Big lane tiles amortize per-step grid overhead and MXU weight pushes; cap
    # to the 128-rounded batch so tiny batches don't over-pad.  On v7x keep
    # b_pad // tb >= 2 (ideally >= 8, even) for two-TensorCore load balance.
    tb = max(128, min(int(tb), ((B + 127) // 128) * 128))
    b_pad = pl.cdiv(B, tb) * tb
    # Padded columns are zeros; every op stays finite (relu/tanh/exp of finite
    # values) and they are sliced off at the end.
    x_p = jnp.pad(x_fm, ((0, 0), (0, b_pad - B))) if b_pad != B else x_fm

    kernel = make_nf_forward_kernel(L, dim, float(dt))
    const3 = lambda i: (0, 0, 0)   # weights stay resident across grid steps

    # Rough VMEM budget (bytes): 2-buffered x in/out tiles + resident
    # (2-buffered) weights + unrolled per-layer (2H,tb)/(2dim,tb) f32 slabs.
    w_bytes = sum(int(a.size) * a.dtype.itemsize for a in (W1f, b1f, W2f, b2f))
    vmem_est = (4 * dim * tb * 4
                + 2 * w_bytes
                + L * (twoH + 2 * dim) * tb * 4
                + 2 * 8 * tb * 4)
    vmem_limit = None
    if vmem_est > 12 * 2**20:                      # above v5e's 16 MiB scoped default
        vmem_limit = int(min(1.25 * vmem_est, 48 * 2**20))   # stay well under v7x's 64 MiB

    cost = pl.CostEstimate(
        flops=int(L * b_pad * (2 * twoH * dim + 2 * (2 * dim) * twoH
                               + twoH + 8 * dim)),
        transcendentals=int(L * b_pad * 2 * dim),
        bytes_accessed=int(2 * dim * b_pad * 4 + b_pad * 4 + w_bytes))

    # NOTE: for large dim/H/L, make the layer axis an "arbitrary" grid dim and
    # give each weight index_map = lambda i, l: (l, 0, 0) to stream weights.
    xo, ldj = pl.pallas_call(
        kernel,
        out_shape=(jax.ShapeDtypeStruct((dim, b_pad), x_fm.dtype),
                   jax.ShapeDtypeStruct((1, b_pad), jnp.float32)),
        grid=(b_pad // tb,),
        in_specs=[
            pl.BlockSpec((dim, tb), lambda i: (0, i)),   # x tile (lane-dense)
            pl.BlockSpec(W1f.shape, const3),
            pl.BlockSpec(b1f.shape, const3),
            pl.BlockSpec(W2f.shape, const3),
            pl.BlockSpec(b2f.shape, const3),
        ],
        out_specs=(pl.BlockSpec((dim, tb), lambda i: (0, i)),
                   pl.BlockSpec((1, tb), lambda i: (0, i))),
        input_output_aliases={0: 0},                     # donate x tile -> xo
        compiler_params=pltpu.CompilerParams(
            dimension_semantics=("parallel",),           # shards steps across TCs (v7x)
            vmem_limit_bytes=vmem_limit),
        cost_estimate=cost,
    )(x_p, W1f, b1f, W2f, b2f)

    return xo[:, :B], ldj[0, :B]


def nf_forward(x, fused_params, dt, *, tb=2048):
    """Batch-major (B, dim) convenience wrapper.

    The two transposes here cost an extra HBM round trip of the activations;
    in a full model keep activations feature-major and call nf_forward_fm.
    """
    y_fm, ldj = nf_forward_fm(x.T, fused_params, dt, tb=tb)
    return y_fm.T, ldj


def init_nf_params(key, dim, hidden_dim, n_blocks, init_scale=0.001):
    """Parameter init matching the PyTorch module (Linear weight = (out, in),
    weight ~ N(0, (init_scale/sqrt(fan_in))^2), bias = 0)."""
    L = 2 * n_blocks
    k = jax.random.split(key, 4)
    std1 = init_scale / math.sqrt(dim)
    std2 = init_scale / math.sqrt(hidden_dim)

    sW1 = jax.random.normal(k[0], (L, hidden_dim, dim), jnp.float32) * std1
    sW2 = jax.random.normal(k[1], (L, dim, hidden_dim), jnp.float32) * std2
    tW1 = jax.random.normal(k[2], (L, hidden_dim, dim), jnp.float32) * std1
    tW2 = jax.random.normal(k[3], (L, dim, hidden_dim), jnp.float32) * std2
    sb1 = jnp.zeros((L, hidden_dim), jnp.float32)
    sb2 = jnp.zeros((L, dim), jnp.float32)
    tb1 = jnp.zeros((L, hidden_dim), jnp.float32)
    tb2 = jnp.zeros((L, dim), jnp.float32)
    return (sW1, sb1, sW2, sb2, tW1, tb1, tW2, tb2)


def fuse_params(params, masks, dim, hidden_dim, dt, mxu_dtype=jnp.float32):
    """Fuse scale/translation nets and fold the coupling masks into the weights.

    - W1 columns scaled by (1 - m): implements the x*(1-m) input masking.
    - W2/b2 scale rows scaled by m: implements m * scale_net(.).
    - W2/b2 translation rows scaled by m*dt: implements m * trans_net(.) * dt.
    Pure host-side precompute; numerically identical to the unfused form.
    mxu_dtype=jnp.bfloat16 halves MXU push bandwidth / VMEM but loosens the
    1e-5 tolerance (keep f32 for exact parity with the reference).
    """
    sW1, sb1, sW2, sb2, tW1, tb1, tW2, tb2 = params
    L, H = sW1.shape[0], hidden_dim
    m = masks[:, :, 0]                                             # (L, dim)

    W1f = jnp.concatenate([sW1, tW1], axis=1) * (1.0 - m)[:, None, :]   # (L, 2H, dim)
    b1f = jnp.concatenate([sb1, tb1], axis=1)[..., None]                # (L, 2H, 1)

    W2f = jnp.zeros((L, 2 * dim, 2 * H), jnp.float32)
    W2f = W2f.at[:, :dim, :H].set(sW2 * m[:, :, None])                  # scale rows * m
    W2f = W2f.at[:, dim:, H:].set(tW2 * (m * dt)[:, :, None])           # trans rows * m*dt
    b2f = jnp.concatenate([sb2 * m, tb2 * m * dt], axis=1)[..., None]   # (L, 2dim, 1)

    return (W1f.astype(mxu_dtype), b1f, W2f.astype(mxu_dtype), b2f)


def build_masks(dim, n_blocks):
    # PyTorch: self.mask = [0]*(dim//2) + [1]*(dim - dim//2); even layers use 1-mask.
    base = jnp.concatenate([jnp.zeros((dim // 2,), jnp.float32),
                            jnp.ones((dim - dim // 2,), jnp.float32)])
    L = 2 * n_blocks
    per_layer = [(1.0 - base) if (l % 2 == 0) else base for l in range(L)]
    return jnp.stack(per_layer, axis=0)[:, :, None]                # (L, dim, 1)


def ref_forward(x, masks, params, dt):
    """Plain-JAX reference of the PyTorch forward (batch-major, unfused)."""
    sW1, sb1, sW2, sb2, tW1, tb1, tW2, tb2 = params
    ldj = jnp.zeros((x.shape[0],), jnp.float32)
    for l in range(masks.shape[0]):
        m = masks[l, :, 0]
        xm = x * (1.0 - m)
        s_raw = jnp.maximum(xm @ sW1[l].T + sb1[l], 0.0) @ sW2[l].T + sb2[l]
        t_raw = jnp.maximum(xm @ tW1[l].T + tb1[l], 0.0) @ tW2[l].T + tb2[l]
        s = jnp.tanh(m * s_raw) * dt
        t = m * t_raw * dt
        ldj = ldj + jnp.sum(s, axis=-1)
        x = (x + t) * jnp.exp(s)
    return x, ldj


# TODO(synk): only the forward pass is implemented; backward/log_prob/sample of
# the PyTorch module (inverse flow + Gaussian prior) are not translated here.

if __name__ == "__main__":
    key = jax.random.PRNGKey(0)
    dim, hidden_dim, n_blocks, batch = 8, 32, 2, 4
    dt = 2.0 / (2 * n_blocks)  # as in the PyTorch module

    kp, kx = jax.random.split(key)
    params = init_nf_params(kp, dim, hidden_dim, n_blocks)
    masks = build_masks(dim, n_blocks)
    fused = fuse_params(params, masks, dim, hidden_dim, dt)
    x = jax.random.normal(kx, (batch, dim), jnp.float32)

    # Feature-major end-to-end (no wrapper transposes around the kernel).
    y_fm, log_det_jac = nf_forward_fm(x.T, fused, dt)
    jax.block_until_ready((y_fm, log_det_jac))
    assert y_fm.shape == (dim, batch) and log_det_jac.shape == (batch,)

    y = y_fm.T
    y_ref, ldj_ref = ref_forward(x, masks, params, dt)
    assert jnp.allclose(y, y_ref, atol=1e-5, rtol=1e-5)
    assert jnp.allclose(log_det_jac, ldj_ref, atol=1e-5, rtol=1e-5)
    print("KERNEL_OK")
</pallas_src>

<mosaic_0001>
module attributes {stable_mosaic.version = 11 : i64} {
  func.func @kernel(%arg0: i32, %arg1: memref<8x128xf32, #tpu.memory_space<vmem>>, %arg2: memref<4x64x8xf32, #tpu.memory_space<vmem>>, %arg3: memref<4x64x1xf32, #tpu.memory_space<vmem>>, %arg4: memref<4x16x64xf32, #tpu.memory_space<vmem>>, %arg5: memref<4x16x1xf32, #tpu.memory_space<vmem>>, %arg6: memref<8x128xf32, #tpu.memory_space<vmem>>, %arg7: memref<1x128xf32, #tpu.memory_space<vmem>>) attributes {dimension_semantics = [#tpu.dimension_semantics<parallel>], iteration_bounds = array<i64: 1>, scalar_prefetch = 0 : i64, scratch_operands = 0 : i64, tpu.core_type = #tpu.core_type<tc>, window_params = [{transform_indices = @transform_0, window_bounds = array<i64: 8, 128>}, {pipeline_mode = #tpu.pipeline_mode<synchronous>, transform_indices = @transform_1, window_bounds = array<i64: 4, 64, 8>}, {pipeline_mode = #tpu.pipeline_mode<synchronous>, transform_indices = @transform_2, window_bounds = array<i64: 4, 64, 1>}, {pipeline_mode = #tpu.pipeline_mode<synchronous>, transform_indices = @transform_3, window_bounds = array<i64: 4, 16, 64>}, {pipeline_mode = #tpu.pipeline_mode<synchronous>, transform_indices = @transform_4, window_bounds = array<i64: 4, 16, 1>}, {transform_indices = @transform_5, window_bounds = array<i64: 8, 128>}, {transform_indices = @transform_6, window_bounds = array<i64: 1, 128>}]} {
    %c0 = arith.constant 0 : index
    %c0_0 = arith.constant 0 : index
    %0 = vector.load %arg1[%c0, %c0_0] : memref<8x128xf32, #tpu.memory_space<vmem>>, vector<8x128xf32>
    %cst = arith.constant 0.000000e+00 : f32
    %1 = vector.broadcast %cst : f32 to vector<1x128xf32>
    %c0_1 = arith.constant 0 : index
    %c0_2 = arith.constant 0 : index
    %c0_3 = arith.constant 0 : index
    %2 = vector.load %arg2[%c0_1, %c0_2, %c0_3] : memref<4x64x8xf32, #tpu.memory_space<vmem>>, vector<1x64x8xf32>
    %3 = vector.shape_cast %2 : vector<1x64x8xf32> to vector<64x8xf32>
    %cst_4 = arith.constant dense<0.000000e+00> : vector<64x128xf32>
    %4 = tpu.matmul %3, %0, %cst_4 {dimension_numbers = #tpu.dot_dimension_numbers<[1], [0], [0], [1], [0, 0, 1, 1], [], []>} : vector<64x8xf32>, vector<8x128xf32>, vector<64x128xf32> -> vector<64x128xf32>
    %c0_5 = arith.constant 0 : index
    %c0_6 = arith.constant 0 : index
    %c0_7 = arith.constant 0 : index
    %5 = vector.load %arg3[%c0_5, %c0_6, %c0_7] : memref<4x64x1xf32, #tpu.memory_space<vmem>>, vector<1x64x1xf32>
    %6 = vector.shape_cast %5 : vector<1x64x1xf32> to vector<64x1xf32>
    %7 = vector.broadcast %6 : vector<64x1xf32> to vector<64x128xf32>
    %8 = arith.addf %4, %7 : vector<64x128xf32>
    %cst_8 = arith.constant 0.000000e+00 : f32
    %9 = vector.broadcast %cst_8 : f32 to vector<64x128xf32>
    %10 = arith.maximumf %8, %9 : vector<64x128xf32>
    %c0_9 = arith.constant 0 : index
    %c0_10 = arith.constant 0 : index
    %c0_11 = arith.constant 0 : index
    %11 = vector.load %arg4[%c0_9, %c0_10, %c0_11] : memref<4x16x64xf32, #tpu.memory_space<vmem>>, vector<1x16x64xf32>
    %12 = vector.shape_cast %11 : vector<1x16x64xf32> to vector<16x64xf32>
    %cst_12 = arith.constant dense<0.000000e+00> : vector<16x128xf32>
    %13 = tpu.matmul %12, %10, %cst_12 {dimension_numbers = #tpu.dot_dimension_numbers<[1], [0], [0], [1], [0, 0, 1, 1], [], []>} : vector<16x64xf32>, vector<64x128xf32>, vector<16x128xf32> -> vector<16x128xf32>
    %c0_13 = arith.constant 0 : index
    %c0_14 = arith.constant 0 : index
    %c0_15 = arith.constant 0 : index
    %14 = vector.load %arg5[%c0_13, %c0_14, %c0_15] : memref<4x16x1xf32, #tpu.memory_space<vmem>>, vector<1x16x1xf32>
    %15 = vector.shape_cast %14 : vector<1x16x1xf32> to vector<16x1xf32>
    %16 = vector.broadcast %15 : vector<16x1xf32> to vector<16x128xf32>
    %17 = arith.addf %13, %16 : vector<16x128xf32>
    %18 = vector.extract_strided_slice %17 {offsets = [0, 0], sizes = [8, 128], strides = [1, 1]} : vector<16x128xf32> to vector<8x128xf32>
    %19 = math.tanh %18 : vector<8x128xf32>
    %cst_16 = arith.constant 5.000000e-01 : f32
    %20 = vector.broadcast %cst_16 : f32 to vector<8x128xf32>
    %21 = arith.mulf %19, %20 : vector<8x128xf32>
    %22 = vector.extract_strided_slice %17 {offsets = [8, 0], sizes = [8, 128], strides = [1, 1]} : vector<16x128xf32> to vector<8x128xf32>
    %cst_17 = arith.constant dense<0.000000e+00> : vector<128xf32>
    %23 = vector.multi_reduction <add>, %21, %cst_17 [0] : vector<8x128xf32> to vector<128xf32>
    %24 = vector.shape_cast %23 : vector<128xf32> to vector<1x128xf32>
    %25 = arith.addf %1, %24 : vector<1x128xf32>
    %26 = arith.addf %0, %22 : vector<8x128xf32>
    %27 = math.exp %21 : vector<8x128xf32>
    %28 = arith.mulf %26, %27 : vector<8x128xf32>
    %c1 = arith.constant 1 : index
    %c0_18 = arith.constant 0 : index
    %c0_19 = arith.constant 0 : index
    %29 = vector.load %arg2[%c1, %c0_18, %c0_19] : memref<4x64x8xf32, #tpu.memory_space<vmem>>, vector<1x64x8xf32>
    %30 = vector.shape_cast %29 : vector<1x64x8xf32> to vector<64x8xf32>
    %cst_20 = arith.constant dense<0.000000e+00> : vector<64x128xf32>
    %31 = tpu.matmul %30, %28, %cst_20 {dimension_numbers = #tpu.dot_dimension_numbers<[1], [0], [0], [1], [0, 0, 1, 1], [], []>} : vector<64x8xf32>, vector<8x128xf32>, vector<64x128xf32> -> vector<64x128xf32>
    %c1_21 = arith.constant 1 : index
    %c0_22 = arith.constant 0 : index
    %c0_23 = arith.constant 0 : index
    %32 = vector.load %arg3[%c1_21, %c0_22, %c0_23] : memref<4x64x1xf32, #tpu.memory_space<vmem>>, vector<1x64x1xf32>
    %33 = vector.shape_cast %32 : vector<1x64x1xf32> to vector<64x1xf32>
    %34 = vector.broadcast %33 : vector<64x1xf32> to vector<64x128xf32>
    %35 = arith.addf %31, %34 : vector<64x128xf32>
    %cst_24 = arith.constant 0.000000e+00 : f32
    %36 = vector.broadcast %cst_24 : f32 to vector<64x128xf32>
    %37 = arith.maximumf %35, %36 : vector<64x128xf32>
    %c1_25 = arith.constant 1 : index
    %c0_26 = arith.constant 0 : index
    %c0_27 = arith.constant 0 : index
    %38 = vector.load %arg4[%c1_25, %c0_26, %c0_27] : memref<4x16x64xf32, #tpu.memory_space<vmem>>, vector<1x16x64xf32>
    %39 = vector.shape_cast %38 : vector<1x16x64xf32> to vector<16x64xf32>
    %cst_28 = arith.constant dense<0.000000e+00> : vector<16x128xf32>
    %40 = tpu.matmul %39, %37, %cst_28 {dimension_numbers = #tpu.dot_dimension_numbers<[1], [0], [0], [1], [0, 0, 1, 1], [], []>} : vector<16x64xf32>, vector<64x128xf32>, vector<16x128xf32> -> vector<16x128xf32>
    %c1_29 = arith.constant 1 : index
    %c0_30 = arith.constant 0 : index
    %c0_31 = arith.constant 0 : index
    %41 = vector.load %arg5[%c1_29, %c0_30, %c0_31] : memref<4x16x1xf32, #tpu.memory_space<vmem>>, vector<1x16x1xf32>
    %42 = vector.shape_cast %41 : vector<1x16x1xf32> to vector<16x1xf32>
    %43 = vector.broadcast %42 : vector<16x1xf32> to vector<16x128xf32>
    %44 = arith.addf %40, %43 : vector<16x128xf32>
    %45 = vector.extract_strided_slice %44 {offsets = [0, 0], sizes = [8, 128], strides = [1, 1]} : vector<16x128xf32> to vector<8x128xf32>
    %46 = math.tanh %45 : vector<8x128xf32>
    %cst_32 = arith.constant 5.000000e-01 : f32
    %47 = vector.broadcast %cst_32 : f32 to vector<8x128xf32>
    %48 = arith.mulf %46, %47 : vector<8x128xf32>
    %49 = vector.extract_strided_slice %44 {offsets = [8, 0], sizes = [8, 128], strides = [1, 1]} : vector<16x128xf32> to vector<8x128xf32>
    %cst_33 = arith.constant dense<0.000000e+00> : vector<128xf32>
    %50 = vector.multi_reduction <add>, %48, %cst_33 [0] : vector<8x128xf32> to vector<128xf32>
    %51 = vector.shape_cast %50 : vector<128xf32> to vector<1x128xf32>
    %52 = arith.addf %25, %51 : vector<1x128xf32>
    %53 = arith.addf %28, %49 : vector<8x128xf32>
    %54 = math.exp %48 : vector<8x128xf32>
    %55 = arith.mulf %53, %54 : vector<8x128xf32>
    %c2 = arith.constant 2 : index
    %c0_34 = arith.constant 0 : index
    %c0_35 = arith.constant 0 : index
    %56 = vector.load %arg2[%c2, %c0_34, %c0_35] : memref<4x64x8xf32, #tpu.memory_space<vmem>>, vector<1x64x8xf32>
    %57 = vector.shape_cast %56 : vector<1x64x8xf32> to vector<64x8xf32>
    %cst_36 = arith.constant dense<0.000000e+00> : vector<64x128xf32>
    %58 = tpu.matmul %57, %55, %cst_36 {dimension_numbers = #tpu.dot_dimension_numbers<[1], [0], [0], [1], [0, 0, 1, 1], [], []>} : vector<64x8xf32>, vector<8x128xf32>, vector<64x128xf32> -> vector<64x128xf32>
    %c2_37 = arith.constant 2 : index
    %c0_38 = arith.constant 0 : index
    %c0_39 = arith.constant 0 : index
    %59 = vector.load %arg3[%c2_37, %c0_38, %c0_39] : memref<4x64x1xf32, #tpu.memory_space<vmem>>, vector<1x64x1xf32>
    %60 = vector.shape_cast %59 : vector<1x64x1xf32> to vector<64x1xf32>
    %61 = vector.broadcast %60 : vector<64x1xf32> to vector<64x128xf32>
    %62 = arith.addf %58, %61 : vector<64x128xf32>
    %cst_40 = arith.constant 0.000000e+00 : f32
    %63 = vector.broadcast %cst_40 : f32 to vector<64x128xf32>
    %64 = arith.maximumf %62, %63 : vector<64x128xf32>
    %c2_41 = arith.constant 2 : index
    %c0_42 = arith.constant 0 : index
    %c0_43 = arith.constant 0 : index
    %65 = vector.load %arg4[%c2_41, %c0_42, %c0_43] : memref<4x16x64xf32, #tpu.memory_space<vmem>>, vector<1x16x64xf32>
    %66 = vector.shape_cast %65 : vector<1x16x64xf32> to vector<16x64xf32>
    %cst_44 = arith.constant dense<0.000000e+00> : vector<16x128xf32>
    %67 = tpu.matmul %66, %64, %cst_44 {dimension_numbers = #tpu.dot_dimension_numbers<[1], [0], [0], [1], [0, 0, 1, 1], [], []>} : vector<16x64xf32>, vector<64x128xf32>, vector<16x128xf32> -> vector<16x128xf32>
    %c2_45 = arith.constant 2 : index
    %c0_46 = arith.constant 0 : index
    %c0_47 = arith.constant 0 : index
    %68 = vector.load %arg5[%c2_45, %c0_46, %c0_47] : memref<4x16x1xf32, #tpu.memory_space<vmem>>, vector<1x16x1xf32>
    %69 = vector.shape_cast %68 : vector<1x16x1xf32> to vector<16x1xf32>
    %70 = vector.broadcast %69 : vector<16x1xf32> to vector<16x128xf32>
    %71 = arith.addf %67, %70 : vector<16x128xf32>
    %72 = vector.extract_strided_slice %71 {offsets = [0, 0], sizes = [8, 128], strides = [1, 1]} : vector<16x128xf32> to vector<8x128xf32>
    %73 = math.tanh %72 : vector<8x128xf32>
    %cst_48 = arith.constant 5.000000e-01 : f32
    %74 = vector.broadcast %cst_48 : f32 to vector<8x128xf32>
    %75 = arith.mulf %73, %74 : vector<8x128xf32>
    %76 = vector.extract_strided_slice %71 {offsets = [8, 0], sizes = [8, 128], strides = [1, 1]} : vector<16x128xf32> to vector<8x128xf32>
    %cst_49 = arith.constant dense<0.000000e+00> : vector<128xf32>
    %77 = vector.multi_reduction <add>, %75, %cst_49 [0] : vector<8x128xf32> to vector<128xf32>
    %78 = vector.shape_cast %77 : vector<128xf32> to vector<1x128xf32>
    %79 = arith.addf %52, %78 : vector<1x128xf32>
    %80 = arith.addf %55, %76 : vector<8x128xf32>
    %81 = math.exp %75 : vector<8x128xf32>
    %82 = arith.mulf %80, %81 : vector<8x128xf32>
    %c3 = arith.constant 3 : index
    %c0_50 = arith.constant 0 : index
    %c0_51 = arith.constant 0 : index
    %83 = vector.load %arg2[%c3, %c0_50, %c0_51] : memref<4x64x8xf32, #tpu.memory_space<vmem>>, vector<1x64x8xf32>
    %84 = vector.shape_cast %83 : vector<1x64x8xf32> to vector<64x8xf32>
    %cst_52 = arith.constant dense<0.000000e+00> : vector<64x128xf32>
    %85 = tpu.matmul %84, %82, %cst_52 {dimension_numbers = #tpu.dot_dimension_numbers<[1], [0], [0], [1], [0, 0, 1, 1], [], []>} : vector<64x8xf32>, vector<8x128xf32>, vector<64x128xf32> -> vector<64x128xf32>
    %c3_53 = arith.constant 3 : index
    %c0_54 = arith.constant 0 : index
    %c0_55 = arith.constant 0 : index
    %86 = vector.load %arg3[%c3_53, %c0_54, %c0_55] : memref<4x64x1xf32, #tpu.memory_space<vmem>>, vector<1x64x1xf32>
    %87 = vector.shape_cast %86 : vector<1x64x1xf32> to vector<64x1xf32>
    %88 = vector.broadcast %87 : vector<64x1xf32> to vector<64x128xf32>
    %89 = arith.addf %85, %88 : vector<64x128xf32>
    %cst_56 = arith.constant 0.000000e+00 : f32
    %90 = vector.broadcast %cst_56 : f32 to vector<64x128xf32>
    %91 = arith.maximumf %89, %90 : vector<64x128xf32>
    %c3_57 = arith.constant 3 : index
    %c0_58 = arith.constant 0 : index
    %c0_59 = arith.constant 0 : index
    %92 = vector.load %arg4[%c3_57, %c0_58, %c0_59] : memref<4x16x64xf32, #tpu.memory_space<vmem>>, vector<1x16x64xf32>
    %93 = vector.shape_cast %92 : vector<1x16x64xf32> to vector<16x64xf32>
    %cst_60 = arith.constant dense<0.000000e+00> : vector<16x128xf32>
    %94 = tpu.matmul %93, %91, %cst_60 {dimension_numbers = #tpu.dot_dimension_numbers<[1], [0], [0], [1], [0, 0, 1, 1], [], []>} : vector<16x64xf32>, vector<64x128xf32>, vector<16x128xf32> -> vector<16x128xf32>
    %c3_61 = arith.constant 3 : index
    %c0_62 = arith.constant 0 : index
    %c0_63 = arith.constant 0 : index
    %95 = vector.load %arg5[%c3_61, %c0_62, %c0_63] : memref<4x16x1xf32, #tpu.memory_space<vmem>>, vector<1x16x1xf32>
    %96 = vector.shape_cast %95 : vector<1x16x1xf32> to vector<16x1xf32>
    %97 = vector.broadcast %96 : vector<16x1xf32> to vector<16x128xf32>
    %98 = arith.addf %94, %97 : vector<16x128xf32>
    %99 = vector.extract_strided_slice %98 {offsets = [0, 0], sizes = [8, 128], strides = [1, 1]} : vector<16x128xf32> to vector<8x128xf32>
    %100 = math.tanh %99 : vector<8x128xf32>
    %cst_64 = arith.constant 5.000000e-01 : f32
    %101 = vector.broadcast %cst_64 : f32 to vector<8x128xf32>
    %102 = arith.mulf %100, %101 : vector<8x128xf32>
    %103 = vector.extract_strided_slice %98 {offsets = [8, 0], sizes = [8, 128], strides = [1, 1]} : vector<16x128xf32> to vector<8x128xf32>
    %cst_65 = arith.constant dense<0.000000e+00> : vector<128xf32>
    %104 = vector.multi_reduction <add>, %102, %cst_65 [0] : vector<8x128xf32> to vector<128xf32>
    %105 = vector.shape_cast %104 : vector<128xf32> to vector<1x128xf32>
    %106 = arith.addf %79, %105 : vector<1x128xf32>
    %107 = arith.addf %82, %103 : vector<8x128xf32>
    %108 = math.exp %102 : vector<8x128xf32>
    %109 = arith.mulf %107, %108 : vector<8x128xf32>
    %c0_66 = arith.constant 0 : index
    %c0_67 = arith.constant 0 : index
    %110 = vector.load %arg6[%c0_66, %c0_67] : memref<8x128xf32, #tpu.memory_space<vmem>>, vector<8x128xf32>
    tpu.vector_store %arg6[%c0_66, %c0_67], %109 {strides = array<i32>} : memref<8x128xf32, #tpu.memory_space<vmem>>, vector<8x128xf32>,
    %c0_68 = arith.constant 0 : index
    %c0_69 = arith.constant 0 : index
    %111 = vector.load %arg7[%c0_68, %c0_69] : memref<1x128xf32, #tpu.memory_space<vmem>>, vector<1x128xf32>
    tpu.vector_store %arg7[%c0_68, %c0_69], %106 {strides = array<i32>} : memref<1x128xf32, #tpu.memory_space<vmem>>, vector<1x128xf32>,
    return
  }
  func.func @transform_0(%arg0: i32) -> (i32, i32) {
    %c0_i32 = arith.constant 0 : i32
    %c0_i32_0 = arith.constant 0 : i32
    return %c0_i32, %arg0 : i32, i32
  }
  func.func @transform_1(%arg0: i32) -> (i32, i32, i32) {
    %c0_i32 = arith.constant 0 : i32
    %c0_i32_0 = arith.constant 0 : i32
    %c0_i32_1 = arith.constant 0 : i32
    %c0_i32_2 = arith.constant 0 : i32
    return %c0_i32, %c0_i32_0, %c0_i32_1 : i32, i32, i32
  }
  func.func @transform_2(%arg0: i32) -> (i32, i32, i32) {
    %c0_i32 = arith.constant 0 : i32
    %c0_i32_0 = arith.constant 0 : i32
    %c0_i32_1 = arith.constant 0 : i32
    %c0_i32_2 = arith.constant 0 : i32
    return %c0_i32, %c0_i32_0, %c0_i32_1 : i32, i32, i32
  }
  func.func @transform_3(%arg0: i32) -> (i32, i32, i32) {
    %c0_i32 = arith.constant 0 : i32
    %c0_i32_0 = arith.constant 0 : i32
    %c0_i32_1 = arith.constant 0 : i32
    %c0_i32_2 = arith.constant 0 : i32
    return %c0_i32, %c0_i32_0, %c0_i32_1 : i32, i32, i32
  }
  func.func @transform_4(%arg0: i32) -> (i32, i32, i32) {
    %c0_i32 = arith.constant 0 : i32
    %c0_i32_0 = arith.constant 0 : i32
    %c0_i32_1 = arith.constant 0 : i32
    %c0_i32_2 = arith.constant 0 : i32
    return %c0_i32, %c0_i32_0, %c0_i32_1 : i32, i32, i32
  }
  func.func @transform_5(%arg0: i32) -> (i32, i32) {
    %c0_i32 = arith.constant 0 : i32
    %c0_i32_0 = arith.constant 0 : i32
    return %c0_i32, %arg0 : i32, i32
  }
  func.func @transform_6(%arg0: i32) -> (i32, i32) {
    %c0_i32 = arith.constant 0 : i32
    %c0_i32_0 = arith.constant 0 : i32
    return %c0_i32, %arg0 : i32, i32
  }
}

</mosaic_0001>

<llo_original>
// kernel: tpu_custom_call.1
$region0: #{tpu_custom_call.1}
  #allocation0 [shape = 'u32[]', space=smem, size = 0x4, offset = 0x4, fixed_abs, tag = 'smem constant byte address 0x4 - core index']
  #allocation1 [shape = 'u32[72,128]{1,0:T(1,128)}', space=vmem, size = 0x9000, scoped, tag = 'internal scratch']
  %s0 = inlined_call_operand.hbm [shape: f32[8,128], index: 0, kind: input, shape index: {}, may-alias: {0,5}]
  %s1 = inlined_call_operand.vmem [shape: f32[4,64,8], index: 1, kind: input, shape index: {}]
  %s2 = inlined_call_operand.vmem [shape: f32[4,64,1], index: 2, kind: input, shape index: {}]
  %s3 = inlined_call_operand.vmem [shape: f32[4,16,64], index: 3, kind: input, shape index: {}]
  %s4 = inlined_call_operand.vmem [shape: f32[4,16,1], index: 4, kind: input, shape index: {}]
  %s5 = inlined_call_operand.hbm [shape: f32[8,128], index: 5, kind: output, shape index: {0}, may-alias: {0,5}]
  %s6 = inlined_call_operand.hbm [shape: f32[1,128], index: 6, kind: output, shape index: {1}]
  %7 = xla_tuple %s5, %s6
  %s8 = sld [smem:[#allocation0]]
  $region42: #{tpu_custom_call.1} parent=0
    _
  %s10 = ssub.s32 1, %s8
  %s11 = scalar_select 0, %s10, %s8
  $region1: #{tpu_custom_call.1} parent=0
    #allocation2 [shape = 'u8[4096]{0}', space=vmem, size = 0x1000, scoped, tag = 'input window, operand 0, single buffered']
    #allocation3 [shape = 's32[1]{0}', space=sflag, size = 0x4, scoped, tag = 'scoped memory for tpu_custom_call.1']
    #allocation4 [shape = 's32[1]{0}', space=sflag, size = 0x4, scoped, tag = 'scoped memory for tpu_custom_call.1']
    #allocation5 [shape = 'u8[4096]{0}', space=vmem, size = 0x1000, scoped, tag = 'output window, operand 0, single buffered']
    #allocation6 [shape = 'u8[512]{0}', space=vmem, size = 0x400, scoped, tag = 'output window, operand 1, single buffered']
    #allocation7 [shape = 's32[1]{0}', space=sflag, size = 0x4, scoped, tag = 'scoped memory for tpu_custom_call.1']
    %12 = vsyncpa [#allocation3], 0
    %13 = vsyncpa [#allocation4], 0
    %14 = vsyncpa [#allocation7], 0
    // Predicated region
    $region2: #{tpu_custom_call.1} parent=1 // pred_check
      _
    $region3: #{tpu_custom_call.1} parent=1 // pred_check_branch
      %16 = sbr.rel (0) target = $region5
    $region4: #{tpu_custom_call.1} parent=1 // pred_region
      %18 = vsyncadd [#allocation3], 0
      %s20 = sshll.u32 %s0, 4
      %s21 = int_to_ptr.hbm [resolvable:$true] %s20
      %s22 = sshll.u32 [#allocation2], 4
      %s23 = int_to_ptr.vmem [resolvable:$true] %s22
      %25 = dma.hbm_to_vmem [thread:$0]  %s21, 128, %s23, [#allocation3]
    $region5: #{tpu_custom_call.1} parent=1 // pred_fallthru
      _
    // Predicated region
    $region6: #{tpu_custom_call.1} parent=1 // pred_check
      _
    $region7: #{tpu_custom_call.1} parent=1 // pred_check_branch
      %27 = sbr.rel (0) target = $region9
    $region8: #{tpu_custom_call.1} parent=1 // pred_region
      _
    $region9: #{tpu_custom_call.1} parent=1 // pred_fallthru
      _
    // Predicated region
    $region10: #{tpu_custom_call.1} parent=1 // pred_check
      _
    $region11: #{tpu_custom_call.1} parent=1 // pred_check_branch
      %29 = sbr.rel (0) target = $region13
    $region12: #{tpu_custom_call.1} parent=1 // pred_region
      _
    $region13: #{tpu_custom_call.1} parent=1 // pred_fallthru
      _
    // Predicated region
    $region14: #{tpu_custom_call.1} parent=1 // pred_check
      _
    $region15: #{tpu_custom_call.1} parent=1 // pred_check_branch
      %31 = sbr.rel (0) target = $region17
    $region16: #{tpu_custom_call.1} parent=1 // pred_region
      _
    $region17: #{tpu_custom_call.1} parent=1 // pred_fallthru
      _
    // Predicated region
    $region18: #{tpu_custom_call.1} parent=1 // pred_check
      _
    $region19: #{tpu_custom_call.1} parent=1 // pred_check_branch
      %33 = sbr.rel (0) target = $region21
    $region20: #{tpu_custom_call.1} parent=1 // pred_region
      _
    $region21: #{tpu_custom_call.1} parent=1 // pred_fallthru
      _
    // Predicated region
    $region22: #{tpu_custom_call.1} parent=1 // pred_check
      _
    $region23: #{tpu_custom_call.1} parent=1 // pred_check_branch
      %35 = sbr.rel (0) target = $region25
    $region24: #{tpu_custom_call.1} parent=1 // pred_region
      %37 = dma.done [#allocation3], 128
    $region25: #{tpu_custom_call.1} parent=1 // pred_fallthru
      _
    %v38 = vld [vmem:[#allocation2] sm:$0xff]
    %v39 = vld [vmem:[%s1] sm:$0xff]
    %v40 = vld [vmem:[%s1 + $0x8] sm:$0xff]
    %v41 = vld [vmem:[%s1 + $0x10] sm:$0xff]
    %v42 = vld [vmem:[%s1 + $0x18] sm:$0xff]
    %v43 = vld [vmem:[%s1 + $0x20] sm:$0xff]
    %v44 = vld [vmem:[%s1 + $0x28] sm:$0xff]
    %v45 = vld [vmem:[%s1 + $0x30] sm:$0xff]
    %v46 = vld [vmem:[%s1 + $0x38] sm:$0xff]
    %v47 = vld [vmem:[%s2] sm:$0xff]
    %v48 = vld [vmem:[%s2 + $0x8] sm:$0xff]
    %v49 = vld [vmem:[%s2 + $0x10] sm:$0xff]
    %v50 = vld [vmem:[%s2 + $0x18] sm:$0xff]
    %v51 = vld [vmem:[%s2 + $0x20] sm:$0xff]
    %v52 = vld [vmem:[%s2 + $0x28] sm:$0xff]
    %v53 = vld [vmem:[%s2 + $0x30] sm:$0xff]
    %v54 = vld [vmem:[%s2 + $0x38] sm:$0xff]
    %56 = vset.pattern.permute.xlu0 0
    %57 = vperm.xlu0 %56, %v47
    %v58 = vpop.permute.xlu0 %57
    %61 = vset.pattern.permute.xlu0 0
    %62 = vperm.xlu0 %61, %v48
    %v63 = vpop.permute.xlu0 %62
    %66 = vset.pattern.permute.xlu0 0
    %67 = vperm.xlu0 %66, %v49
    %v68 = vpop.permute.xlu0 %67
    %71 = vset.pattern.permute.xlu0 0
    %72 = vperm.xlu0 %71, %v50
    %v73 = vpop.permute.xlu0 %72
    %76 = vset.pattern.permute.xlu0 0
    %77 = vperm.xlu0 %76, %v51
    %v78 = vpop.permute.xlu0 %77
    %81 = vset.pattern.permute.xlu0 0
    %82 = vperm.xlu0 %81, %v52
    %v83 = vpop.permute.xlu0 %82
    %86 = vset.pattern.permute.xlu0 0
    %87 = vperm.xlu0 %86, %v53
    %v88 = vpop.permute.xlu0 %87
    %91 = vset.pattern.permute.xlu0 0
    %92 = vperm.xlu0 %91, %v54
    %v93 = vpop.permute.xlu0 %92
    %vm95 = vcmask 64512
    %v97 = vsel %vm95, %v39, 0
    %v100 = vsel %vm95, %v40, 0
    %v103 = vsel %vm95, %v41, 0
    %v106 = vsel %vm95, %v42, 0
    %v109 = vsel %vm95, %v43, 0
    %v112 = vsel %vm95, %v44, 0
    %v115 = vsel %vm95, %v45, 0
    %v118 = vsel %vm95, %v46, 0
    %120 = vmatpush.msra.mxu0 0.0
    %121 = vmatpush.msra.mxu0 0.0
    %122 = vmatpush.msra.mxu0 0.0
    %123 = vmatpush.msra.mxu0 0.0
    %124 = vmatpush.msra.mxu0 0.0
    %125 = vmatpush.msra.mxu0 0.0
    %126 = vmatpush.msra.mxu0 0.0
    %127 = vmatpush.msra.mxu0 0.0
    %128 = vmatpush.msra.mxu0 0.0
    %129 = vmatpush.msra.mxu0 0.0
    %130 = vmatpush.msra.mxu0 0.0
    %131 = vmatpush.msra.mxu0 0.0
    %132 = vmatpush.msra.mxu0 0.0
    %133 = vmatpush.msra.mxu0 0.0
    %134 = vmatpush.msra.mxu0 0.0
    %135 = vmatpush.msra.mxu0 %v38
    %136 = vmatmul.f32.gmra.mxu0 %v97
    %v137 = vpop.f32.mrf.mxu0
    %v138 = vadd.f32 %v58, %v137
    %139 = vmatmul.f32.gmra.mxu0 %v100
    %v140 = vpop.f32.mrf.mxu0
    %v141 = vadd.f32 %v63, %v140
    %142 = vmatmul.f32.gmra.mxu0 %v103
    %v143 = vpop.f32.mrf.mxu0
    %v144 = vadd.f32 %v68, %v143
    %145 = vmatmul.f32.gmra.mxu0 %v106
    %v146 = vpop.f32.mrf.mxu0
    %v147 = vadd.f32 %v73, %v146
    %148 = vmatmul.f32.gmra.mxu0 %v109
    %v149 = vpop.f32.mrf.mxu0
    %v150 = vadd.f32 %v78, %v149
    %151 = vmatmul.f32.gmra.mxu0 %v112
    %v152 = vpop.f32.mrf.mxu0
    %v153 = vadd.f32 %v83, %v152
    %154 = vmatmul.f32.gmra.mxu0 %v115
    %v155 = vpop.f32.mrf.mxu0
    %v156 = vadd.f32 %v88, %v155
    %157 = vmatmul.f32.gmra.mxu0 %v118
    %v158 = vpop.f32.mrf.mxu0
    %v159 = vadd.f32 %v93, %v158
    %160 = vdwg.mxu0
    %v161 = vmax.f32 %v138, 0.0
    %v162 = vmax.f32 %v141, 0.0
    %v163 = vmax.f32 %v144, 0.0
    %v164 = vmax.f32 %v147, 0.0
    %v165 = vmax.f32 %v150, 0.0
    %v166 = vmax.f32 %v153, 0.0
    %v167 = vmax.f32 %v156, 0.0
    %v168 = vmax.f32 %v159, 0.0
    %v169 = vld [vmem:[%s3] sm:$0xff]
    %v170 = vld [vmem:[%s3 + $0x8] sm:$0xff]
    %v171 = vld [vmem:[%s4] sm:$0xff]
    %v172 = vld [vmem:[%s4 + $0x8] sm:$0xff]
    %174 = vset.pattern.permute.xlu0 0
    %175 = vperm.xlu0 %174, %v171
    %v176 = vpop.permute.xlu0 %175
    %179 = vset.pattern.permute.xlu0 0
    %180 = vperm.xlu0 %179, %v172
    %v181 = vpop.permute.xlu0 %180
    %vm183 = vcmask 523264
    %v185 = vsel %vm183, %v169, 0
    %v188 = vsel %vm183, %v170, 0
    %190 = vmatpush.msra.mxu0 0.0
    %191 = vmatpush.msra.mxu0 0.0
    %192 = vmatpush.msra.mxu0 0.0
    %193 = vmatpush.msra.mxu0 0.0
    %194 = vmatpush.msra.mxu0 0.0
    %195 = vmatpush.msra.mxu0 0.0
    %196 = vmatpush.msra.mxu0 0.0
    %197 = vmatpush.msra.mxu0 0.0
    %198 = vmatpush.msra.mxu0 %v168
    %199 = vmatpush.msra.mxu0 %v167
    %200 = vmatpush.msra.mxu0 %v166
    %201 = vmatpush.msra.mxu0 %v165
    %202 = vmatpush.msra.mxu0 %v164
    %203 = vmatpush.msra.mxu0 %v163
    %204 = vmatpush.msra.mxu0 %v162
    %205 = vmatpush.msra.mxu0 %v161
    %206 = vmatmul.f32.gmra.mxu0 %v185
    %v207 = vpop.f32.mrf.mxu0
    %v208 = vadd.f32 %v176, %v207
    %209 = vmatmul.f32.gmra.mxu0 %v188
    %v210 = vpop.f32.mrf.mxu0
    %v211 = vadd.f32 %v181, %v210
    %212 = vdwg.mxu0
    %v213 = vtanh.pop %v208
    %v214 = vmul.f32 %v213, 0.5
    %v215 = vrot.slane %v214, 4
    %v216 = vadd.f32 %v214, %v215
    %v217 = vrot.slane %v216, 2
    %v218 = vadd.f32 %v216, %v217
    %v219 = vrot.slane %v218, 1
    %v220 = vadd.f32 %v218, %v219
    %v221 = vadd.f32 %v220, 0.0
    %v222 = vadd.f32 %v38, %v211
    %v223 = vmul.f32 %v214, 1.442695
    %v224 = vpow.pop %v223
    %v225 = vmul.f32 %v222, %v224
    %s226 = scalar_lea.vmem %s1, 64
    %v227 = vld [vmem:[%s226] sm:$0xff]
    %v228 = vld [vmem:[%s226 + $0x8] sm:$0xff]
    %v229 = vld [vmem:[%s226 + $0x10] sm:$0xff]
    %v230 = vld [vmem:[%s226 + $0x18] sm:$0xff]
    %v231 = vld [vmem:[%s226 + $0x20] sm:$0xff]
    %v232 = vld [vmem:[%s226 + $0x28] sm:$0xff]
    %v233 = vld [vmem:[%s226 + $0x30] sm:$0xff]
    %v234 = vld [vmem:[%s226 + $0x38] sm:$0xff]
    %s235 = scalar_lea.vmem %s2, 64
    %v236 = vld [vmem:[%s235] sm:$0xff]
    %v237 = vld [vmem:[%s235 + $0x8] sm:$0xff]
    %v238 = vld [vmem:[%s235 + $0x10] sm:$0xff]
    %v239 = vld [vmem:[%s235 + $0x18] sm:$0xff]
    %v240 = vld [vmem:[%s235 + $0x20] sm:$0xff]
    %v241 = vld [vmem:[%s235 + $0x28] sm:$0xff]
    %v242 = vld [vmem:[%s235 + $0x30] sm:$0xff]
    %v243 = vld [vmem:[%s235 + $0x38] sm:$0xff]
    %245 = vset.pattern.permute.xlu0 0
    %246 = vperm.xlu0 %245, %v236
    %v247 = vpop.permute.xlu0 %246
    %250 = vset.pattern.permute.xlu0 0
    %251 = vperm.xlu0 %250, %v237
    %v252 = vpop.permute.xlu0 %251
    %255 = vset.pattern.permute.xlu0 0
    %256 = vperm.xlu0 %255, %v238
    %v257 = vpop.permute.xlu0 %256
    %260 = vset.pattern.permute.xlu0 0
    %261 = vperm.xlu0 %260, %v239
    %v262 = vpop.permute.xlu0 %261
    %265 = vset.pattern.permute.xlu0 0
    %266 = vperm.xlu0 %265, %v240
    %v267 = vpop.permute.xlu0 %266
    %270 = vset.pattern.permute.xlu0 0
    %271 = vperm.xlu0 %270, %v241
    %v272 = vpop.permute.xlu0 %271
    %275 = vset.pattern.permute.xlu0 0
    %276 = vperm.xlu0 %275, %v242
    %v277 = vpop.permute.xlu0 %276
    %280 = vset.pattern.permute.xlu0 0
    %281 = vperm.xlu0 %280, %v243
    %v282 = vpop.permute.xlu0 %281
    %v285 = vsel %vm95, %v227, 0
    %v288 = vsel %vm95, %v228, 0
    %v291 = vsel %vm95, %v229, 0
    %v294 = vsel %vm95, %v230, 0
    %v297 = vsel %vm95, %v231, 0
    %v300 = vsel %vm95, %v232, 0
    %v303 = vsel %vm95, %v233, 0
    %v306 = vsel %vm95, %v234, 0
    %308 = vmatpush.msra.mxu0 0.0
    %309 = vmatpush.msra.mxu0 0.0
    %310 = vmatpush.msra.mxu0 0.0
    %311 = vmatpush.msra.mxu0 0.0
    %312 = vmatpush.msra.mxu0 0.0
    %313 = vmatpush.msra.mxu0 0.0
    %314 = vmatpush.msra.mxu0 0.0
    %315 = vmatpush.msra.mxu0 0.0
    %316 = vmatpush.msra.mxu0 0.0
    %317 = vmatpush.msra.mxu0 0.0
    %318 = vmatpush.msra.mxu0 0.0
    %319 = vmatpush.msra.mxu0 0.0
    %320 = vmatpush.msra.mxu0 0.0
    %321 = vmatpush.msra.mxu0 0.0
    %322 = vmatpush.msra.mxu0 0.0
    %323 = vmatpush.msra.mxu0 %v225
    %324 = vmatmul.f32.gmra.mxu0 %v285
    %v325 = vpop.f32.mrf.mxu0
    %v326 = vadd.f32 %v247, %v325
    %327 = vmatmul.f32.gmra.mxu0 %v288
    %v328 = vpop.f32.mrf.mxu0
    %v329 = vadd.f32 %v252, %v328
    %330 = vmatmul.f32.gmra.mxu0 %v291
    %v331 = vpop.f32.mrf.mxu0
    %v332 = vadd.f32 %v257, %v331
    %333 = vmatmul.f32.gmra.mxu0 %v294
    %v334 = vpop.f32.mrf.mxu0
    %v335 = vadd.f32 %v262, %v334
    %336 = vmatmul.f32.gmra.mxu0 %v297
    %v337 = vpop.f32.mrf.mxu0
    %v338 = vadd.f32 %v267, %v337
    %339 = vmatmul.f32.gmra.mxu0 %v300
    %v340 = vpop.f32.mrf.mxu0
    %v341 = vadd.f32 %v272, %v340
    %342 = vmatmul.f32.gmra.mxu0 %v303
    %v343 = vpop.f32.mrf.mxu0
    %v344 = vadd.f32 %v277, %v343
    %345 = vmatmul.f32.gmra.mxu0 %v306
    %v346 = vpop.f32.mrf.mxu0
    %v347 = vadd.f32 %v282, %v346
    %348 = vdwg.mxu0
    %v349 = vmax.f32 %v326, 0.0
    %v350 = vmax.f32 %v329, 0.0
    %v351 = vmax.f32 %v332, 0.0
    %v352 = vmax.f32 %v335, 0.0
    %v353 = vmax.f32 %v338, 0.0
    %v354 = vmax.f32 %v341, 0.0
    %v355 = vmax.f32 %v344, 0.0
    %v356 = vmax.f32 %v347, 0.0
    %s357 = scalar_lea.vmem %s3, 16
    %v358 = vld [vmem:[%s357] sm:$0xff]
    %v359 = vld [vmem:[%s357 + $0x8] sm:$0xff]
    %s360 = scalar_lea.vmem %s4, 16
    %v361 = vld [vmem:[%s360] sm:$0xff]
    %v362 = vld [vmem:[%s360 + $0x8] sm:$0xff]
    %364 = vset.pattern.permute.xlu0 0
    %365 = vperm.xlu0 %364, %v361
    %v366 = vpop.permute.xlu0 %365
    %369 = vset.pattern.permute.xlu0 0
    %370 = vperm.xlu0 %369, %v362
    %v371 = vpop.permute.xlu0 %370
    %v374 = vsel %vm183, %v358, 0
    %v377 = vsel %vm183, %v359, 0
    %379 = vmatpush.msra.mxu0 0.0
    %380 = vmatpush.msra.mxu0 0.0
    %381 = vmatpush.msra.mxu0 0.0
    %382 = vmatpush.msra.mxu0 0.0
    %383 = vmatpush.msra.mxu0 0.0
    %384 = vmatpush.msra.mxu0 0.0
    %385 = vmatpush.msra.mxu0 0.0
    %386 = vmatpush.msra.mxu0 0.0
    %387 = vmatpush.msra.mxu0 %v356
    %388 = vmatpush.msra.mxu0 %v355
    %389 = vmatpush.msra.mxu0 %v354
    %390 = vmatpush.msra.mxu0 %v353
    %391 = vmatpush.msra.mxu0 %v352
    %392 = vmatpush.msra.mxu0 %v351
    %393 = vmatpush.msra.mxu0 %v350
    %394 = vmatpush.msra.mxu0 %v349
    %395 = vmatmul.f32.gmra.mxu0 %v374
    %v396 = vpop.f32.mrf.mxu0
    %v397 = vadd.f32 %v366, %v396
    %398 = vmatmul.f32.gmra.mxu0 %v377
    %v399 = vpop.f32.mrf.mxu0
    %v400 = vadd.f32 %v371, %v399
    %401 = vdwg.mxu0
    %v402 = vtanh.pop %v397
    %v403 = vmul.f32 %v402, 0.5
    %v404 = vrot.slane %v403, 4
    %v405 = vadd.f32 %v403, %v404
    %v406 = vrot.slane %v405, 2
    %v407 = vadd.f32 %v405, %v406
    %v408 = vrot.slane %v407, 1
    %v409 = vadd.f32 %v407, %v408
    %v410 = vadd.f32 %v221, %v409
    %v411 = vadd.f32 %v225, %v400
    %v412 = vmul.f32 %v403, 1.442695
    %v413 = vpow.pop %v412
    %v414 = vmul.f32 %v411, %v413
    %s415 = scalar_lea.vmem %s1, 128
    %v416 = vld [vmem:[%s415] sm:$0xff]
    %v417 = vld [vmem:[%s415 + $0x8] sm:$0xff]
    %v418 = vld [vmem:[%s415 + $0x10] sm:$0xff]
    %v419 = vld [vmem:[%s415 + $0x18] sm:$0xff]
    %v420 = vld [vmem:[%s415 + $0x20] sm:$0xff]
    %v421 = vld [vmem:[%s415 + $0x28] sm:$0xff]
    %v422 = vld [vmem:[%s415 + $0x30] sm:$0xff]
    %v423 = vld [vmem:[%s415 + $0x38] sm:$0xff]
    %s424 = scalar_lea.vmem %s2, 128
    %v425 = vld [vmem:[%s424] sm:$0xff]
    %v426 = vld [vmem:[%s424 + $0x8] sm:$0xff]
    %v427 = vld [vmem:[%s424 + $0x10] sm:$0xff]
    %v428 = vld [vmem:[%s424 + $0x18] sm:$0xff]
    %v429 = vld [vmem:[%s424 + $0x20] sm:$0xff]
    %v430 = vld [vmem:[%s424 + $0x28] sm:$0xff]
    %v431 = vld [vmem:[%s424 + $0x30] sm:$0xff]
    %v432 = vld [vmem:[%s424 + $0x38] sm:$0xff]
    %434 = vset.pattern.permute.xlu0 0
    %435 = vperm.xlu0 %434, %v425
    %v436 = vpop.permute.xlu0 %435
    %439 = vset.pattern.permute.xlu0 0
    %440 = vperm.xlu0 %439, %v426
    %v441 = vpop.permute.xlu0 %440
    %444 = vset.pattern.permute.xlu0 0
    %445 = vperm.xlu0 %444, %v427
    %v446 = vpop.permute.xlu0 %445
    %449 = vset.pattern.permute.xlu0 0
    %450 = vperm.xlu0 %449, %v428
    %v451 = vpop.permute.xlu0 %450
    %454 = vset.pattern.permute.xlu0 0
    %455 = vperm.xlu0 %454, %v429
    %v456 = vpop.permute.xlu0 %455
    %459 = vset.pattern.permute.xlu0 0
    %460 = vperm.xlu0 %459, %v430
    %v461 = vpop.permute.xlu0 %460
    %464 = vset.pattern.permute.xlu0 0
    %465 = vperm.xlu0 %464, %v431
    %v466 = vpop.permute.xlu0 %465
    %469 = vset.pattern.permute.xlu0 0
    %470 = vperm.xlu0 %469, %v432
    %v471 = vpop.permute.xlu0 %470
    %v474 = vsel %vm95, %v416, 0
    %v477 = vsel %vm95, %v417, 0
    %v480 = vsel %vm95, %v418, 0
    %v483 = vsel %vm95, %v419, 0
    %v486 = vsel %vm95, %v420, 0
    %v489 = vsel %vm95, %v421, 0
    %v492 = vsel %vm95, %v422, 0
    %v495 = vsel %vm95, %v423, 0
    %497 = vmatpush.msra.mxu0 0.0
    %498 = vmatpush.msra.mxu0 0.0
    %499 = vmatpush.msra.mxu0 0.0
    %500 = vmatpush.msra.mxu0 0.0
    %501 = vmatpush.msra.mxu0 0.0
    %502 = vmatpush.msra.mxu0 0.0
    %503 = vmatpush.msra.mxu0 0.0
    %504 = vmatpush.msra.mxu0 0.0
    %505 = vmatpush.msra.mxu0 0.0
    %506 = vmatpush.msra.mxu0 0.0
    %507 = vmatpush.msra.mxu0 0.0
    %508 = vmatpush.msra.mxu0 0.0
    %509 = vmatpush.msra.mxu0 0.0
    %510 = vmatpush.msra.mxu0 0.0
    %511 = vmatpush.msra.mxu0 0.0
    %512 = vmatpush.msra.mxu0 %v414
    %513 = vmatmul.f32.gmra.mxu0 %v474
    %v514 = vpop.f32.mrf.mxu0
    %v515 = vadd.f32 %v436, %v514
    %516 = vmatmul.f32.gmra.mxu0 %v477
    %v517 = vpop.f32.mrf.mxu0
    %v518 = vadd.f32 %v441, %v517
    %519 = vmatmul.f32.gmra.mxu0 %v480
    %v520 = vpop.f32.mrf.mxu0
    %v521 = vadd.f32 %v446, %v520
    %522 = vmatmul.f32.gmra.mxu0 %v483
    %v523 = vpop.f32.mrf.mxu0
    %v524 = vadd.f32 %v451, %v523
    %525 = vmatmul.f32.gmra.mxu0 %v486
    %v526 = vpop.f32.mrf.mxu0
    %v527 = vadd.f32 %v456, %v526
    %528 = vmatmul.f32.gmra.mxu0 %v489
    %v529 = vpop.f32.mrf.mxu0
    %v530 = vadd.f32 %v461, %v529
    %531 = vmatmul.f32.gmra.mxu0 %v492
    %v532 = vpop.f32.mrf.mxu0
    %v533 = vadd.f32 %v466, %v532
    %534 = vmatmul.f32.gmra.mxu0 %v495
    %v535 = vpop.f32.mrf.mxu0
    %v536 = vadd.f32 %v471, %v535
    %537 = vdwg.mxu0
    %v538 = vmax.f32 %v515, 0.0
    %v539 = vmax.f32 %v518, 0.0
    %v540 = vmax.f32 %v521, 0.0
    %v541 = vmax.f32 %v524, 0.0
    %v542 = vmax.f32 %v527, 0.0
    %v543 = vmax.f32 %v530, 0.0
    %v544 = vmax.f32 %v533, 0.0
    %v545 = vmax.f32 %v536, 0.0
    %s546 = scalar_lea.vmem %s3, 32
    %v547 = vld [vmem:[%s546] sm:$0xff]
    %v548 = vld [vmem:[%s546 + $0x8] sm:$0xff]
    %s549 = scalar_lea.vmem %s4, 32
    %v550 = vld [vmem:[%s549] sm:$0xff]
    %v551 = vld [vmem:[%s549 + $0x8] sm:$0xff]
    %553 = vset.pattern.permute.xlu0 0
    %554 = vperm.xlu0 %553, %v550
    %v555 = vpop.permute.xlu0 %554
    %558 = vset.pattern.permute.xlu0 0
    %559 = vperm.xlu0 %558, %v551
    %v560 = vpop.permute.xlu0 %559
    %v563 = vsel %vm183, %v547, 0
    %v566 = vsel %vm183, %v548, 0
    %568 = vmatpush.msra.mxu0 0.0
    %569 = vmatpush.msra.mxu0 0.0
    %570 = vmatpush.msra.mxu0 0.0
    %571 = vmatpush.msra.mxu0 0.0
    %572 = vmatpush.msra.mxu0 0.0
    %573 = vmatpush.msra.mxu0 0.0
    %574 = vmatpush.msra.mxu0 0.0
    %575 = vmatpush.msra.mxu0 0.0
    %576 = vmatpush.msra.mxu0 %v545
    %577 = vmatpush.msra.mxu0 %v544
    %578 = vmatpush.msra.mxu0 %v543
    %579 = vmatpush.msra.mxu0 %v542
    %580 = vmatpush.msra.mxu0 %v541
    %581 = vmatpush.msra.mxu0 %v540
    %582 = vmatpush.msra.mxu0 %v539
    %583 = vmatpush.msra.mxu0 %v538
    %584 = vmatmul.f32.gmra.mxu0 %v563
    %v585 = vpop.f32.mrf.mxu0
    %v586 = vadd.f32 %v555, %v585
    %587 = vmatmul.f32.gmra.mxu0 %v566
    %v588 = vpop.f32.mrf.mxu0
    %v589 = vadd.f32 %v560, %v588
    %590 = vdwg.mxu0
    %v591 = vtanh.pop %v586
    %v592 = vmul.f32 %v591, 0.5
    %v593 = vrot.slane %v592, 4
    %v594 = vadd.f32 %v592, %v593
    %v595 = vrot.slane %v594, 2
    %v596 = vadd.f32 %v594, %v595
    %v597 = vrot.slane %v596, 1
    %v598 = vadd.f32 %v596, %v597
    %v599 = vadd.f32 %v410, %v598
    %v600 = vadd.f32 %v414, %v589
    %v601 = vmul.f32 %v592, 1.442695
    %v602 = vpow.pop %v601
    %v603 = vmul.f32 %v600, %v602
    %s604 = scalar_lea.vmem %s1, 192
    %v605 = vld [vmem:[%s604] sm:$0xff]
    %v606 = vld [vmem:[%s604 + $0x8] sm:$0xff]
    %v607 = vld [vmem:[%s604 + $0x10] sm:$0xff]
    %v608 = vld [vmem:[%s604 + $0x18] sm:$0xff]
    %v609 = vld [vmem:[%s604 + $0x20] sm:$0xff]
    %v610 = vld [vmem:[%s604 + $0x28] sm:$0xff]
    %v611 = vld [vmem:[%s604 + $0x30] sm:$0xff]
    %v612 = vld [vmem:[%s604 + $0x38] sm:$0xff]
    %s613 = scalar_lea.vmem %s2, 192
    %v614 = vld [vmem:[%s613] sm:$0xff]
    %v615 = vld [vmem:[%s613 + $0x8] sm:$0xff]
    %v616 = vld [vmem:[%s613 + $0x10] sm:$0xff]
    %v617 = vld [vmem:[%s613 + $0x18] sm:$0xff]
    %v618 = vld [vmem:[%s613 + $0x20] sm:$0xff]
    %v619 = vld [vmem:[%s613 + $0x28] sm:$0xff]
    %v620 = vld [vmem:[%s613 + $0x30] sm:$0xff]
    %v621 = vld [vmem:[%s613 + $0x38] sm:$0xff]
    %623 = vset.pattern.permute.xlu0 0
    %624 = vperm.xlu0 %623, %v614
    %v625 = vpop.permute.xlu0 %624
    %628 = vset.pattern.permute.xlu0 0
    %629 = vperm.xlu0 %628, %v615
    %v630 = vpop.permute.xlu0 %629
    %633 = vset.pattern.permute.xlu0 0
    %634 = vperm.xlu0 %633, %v616
    %v635 = vpop.permute.xlu0 %634
    %638 = vset.pattern.permute.xlu0 0
    %639 = vperm.xlu0 %638, %v617
    %v640 = vpop.permute.xlu0 %639
    %643 = vset.pattern.permute.xlu0 0
    %644 = vperm.xlu0 %643, %v618
    %v645 = vpop.permute.xlu0 %644
    %648 = vset.pattern.permute.xlu0 0
    %649 = vperm.xlu0 %648, %v619
    %v650 = vpop.permute.xlu0 %649
    %653 = vset.pattern.permute.xlu0 0
    %654 = vperm.xlu0 %653, %v620
    %v655 = vpop.permute.xlu0 %654
    %658 = vset.pattern.permute.xlu0 0
    %659 = vperm.xlu0 %658, %v621
    %v660 = vpop.permute.xlu0 %659
    %v663 = vsel %vm95, %v605, 0
    %v666 = vsel %vm95, %v606, 0
    %v669 = vsel %vm95, %v607, 0
    %v672 = vsel %vm95, %v608, 0
    %v675 = vsel %vm95, %v609, 0
    %v678 = vsel %vm95, %v610, 0
    %v681 = vsel %vm95, %v611, 0
    %v684 = vsel %vm95, %v612, 0
    %686 = vmatpush.msra.mxu0 0.0
    %687 = vmatpush.msra.mxu0 0.0
    %688 = vmatpush.msra.mxu0 0.0
    %689 = vmatpush.msra.mxu0 0.0
    %690 = vmatpush.msra.mxu0 0.0
    %691 = vmatpush.msra.mxu0 0.0
    %692 = vmatpush.msra.mxu0 0.0
    %693 = vmatpush.msra.mxu0 0.0
    %694 = vmatpush.msra.mxu0 0.0
    %695 = vmatpush.msra.mxu0 0.0
    %696 = vmatpush.msra.mxu0 0.0
    %697 = vmatpush.msra.mxu0 0.0
    %698 = vmatpush.msra.mxu0 0.0
    %699 = vmatpush.msra.mxu0 0.0
    %700 = vmatpush.msra.mxu0 0.0
    %701 = vmatpush.msra.mxu0 %v603
    %702 = vmatmul.f32.gmra.mxu0 %v663
    %v703 = vpop.f32.mrf.mxu0
    %v704 = vadd.f32 %v625, %v703
    %705 = vmatmul.f32.gmra.mxu0 %v666
    %v706 = vpop.f32.mrf.mxu0
    %v707 = vadd.f32 %v630, %v706
    %708 = vmatmul.f32.gmra.mxu0 %v669
    %v709 = vpop.f32.mrf.mxu0
    %v710 = vadd.f32 %v635, %v709
    %711 = vmatmul.f32.gmra.mxu0 %v672
    %v712 = vpop.f32.mrf.mxu0
    %v713 = vadd.f32 %v640, %v712
    %714 = vmatmul.f32.gmra.mxu0 %v675
    %v715 = vpop.f32.mrf.mxu0
    %v716 = vadd.f32 %v645, %v715
    %717 = vmatmul.f32.gmra.mxu0 %v678
    %v718 = vpop.f32.mrf.mxu0
    %v719 = vadd.f32 %v650, %v718
    %720 = vmatmul.f32.gmra.mxu0 %v681
    %v721 = vpop.f32.mrf.mxu0
    %v722 = vadd.f32 %v655, %v721
    %723 = vmatmul.f32.gmra.mxu0 %v684
    %v724 = vpop.f32.mrf.mxu0
    %v725 = vadd.f32 %v660, %v724
    %726 = vdwg.mxu0
    %v727 = vmax.f32 %v704, 0.0
    %v728 = vmax.f32 %v707, 0.0
    %v729 = vmax.f32 %v710, 0.0
    %v730 = vmax.f32 %v713, 0.0
    %v731 = vmax.f32 %v716, 0.0
    %v732 = vmax.f32 %v719, 0.0
    %v733 = vmax.f32 %v722, 0.0
    %v734 = vmax.f32 %v725, 0.0
    %s735 = scalar_lea.vmem %s3, 48
    %v736 = vld [vmem:[%s735] sm:$0xff]
    %v737 = vld [vmem:[%s735 + $0x8] sm:$0xff]
    %s738 = scalar_lea.vmem %s4, 48
    %v739 = vld [vmem:[%s738] sm:$0xff]
    %v740 = vld [vmem:[%s738 + $0x8] sm:$0xff]
    %742 = vset.pattern.permute.xlu0 0
    %743 = vperm.xlu0 %742, %v739
    %v744 = vpop.permute.xlu0 %743
    %747 = vset.pattern.permute.xlu0 0
    %748 = vperm.xlu0 %747, %v740
    %v749 = vpop.permute.xlu0 %748
    %v752 = vsel %vm183, %v736, 0
    %v755 = vsel %vm183, %v737, 0
    %757 = vmatpush.msra.mxu0 0.0
    %758 = vmatpush.msra.mxu0 0.0
    %759 = vmatpush.msra.mxu0 0.0
    %760 = vmatpush.msra.mxu0 0.0
    %761 = vmatpush.msra.mxu0 0.0
    %762 = vmatpush.msra.mxu0 0.0
    %763 = vmatpush.msra.mxu0 0.0
    %764 = vmatpush.msra.mxu0 0.0
    %765 = vmatpush.msra.mxu0 %v734
    %766 = vmatpush.msra.mxu0 %v733
    %767 = vmatpush.msra.mxu0 %v732
    %768 = vmatpush.msra.mxu0 %v731
    %769 = vmatpush.msra.mxu0 %v730
    %770 = vmatpush.msra.mxu0 %v729
    %771 = vmatpush.msra.mxu0 %v728
    %772 = vmatpush.msra.mxu0 %v727
    %773 = vmatmul.f32.gmra.mxu0 %v752
    %v774 = vpop.f32.mrf.mxu0
    %v775 = vadd.f32 %v744, %v774
    %776 = vmatmul.f32.gmra.mxu0 %v755
    %v777 = vpop.f32.mrf.mxu0
    %v778 = vadd.f32 %v749, %v777
    %779 = vdwg.mxu0
    %v780 = vtanh.pop %v775
    %v781 = vmul.f32 %v780, 0.5
    %v782 = vrot.slane %v781, 4
    %v783 = vadd.f32 %v781, %v782
    %v784 = vrot.slane %v783, 2
    %v785 = vadd.f32 %v783, %v784
    %v786 = vrot.slane %v785, 1
    %v787 = vadd.f32 %v785, %v786
    %v788 = vadd.f32 %v599, %v787
    %v789 = vadd.f32 %v603, %v778
    %v790 = vmul.f32 %v781, 1.442695
    %v791 = vpow.pop %v790
    %v792 = vmul.f32 %v789, %v791
    %793 = vst [vmem:[#allocation5] sm:$0xff] %v792
    %794 = vst [vmem:[#allocation6] sm:$0x1] %v788
    // Predicated region
    $region26: #{tpu_custom_call.1} parent=1 // pred_check
      _
    $region27: #{tpu_custom_call.1} parent=1 // pred_check_branch
      %796 = sbr.rel (0) target = $region29
    $region28: #{tpu_custom_call.1} parent=1 // pred_region
      %798 = vsyncadd [#allocation4], 0
      %s800 = sshll.u32 [#allocation5], 4
      %s801 = int_to_ptr.vmem [resolvable:$true] %s800
      %s802 = sshll.u32 %s5, 4
      %s803 = int_to_ptr.hbm [resolvable:$true] %s802
      %805 = dma.vmem_to_hbm [thread:$0]  %s801, 128, %s803, [#allocation4]
    $region29: #{tpu_custom_call.1} parent=1 // pred_fallthru
      _
    // Predicated region
    $region30: #{tpu_custom_call.1} parent=1 // pred_check
      _
    $region31: #{tpu_custom_call.1} parent=1 // pred_check_branch
      %807 = sbr.rel (0) target = $region33
    $region32: #{tpu_custom_call.1} parent=1 // pred_region
      %809 = vsyncadd [#allocation7], 0
      %s811 = sshll.u32 [#allocation6], 4
      %s812 = int_to_ptr.vmem [resolvable:$true] %s811
      %s813 = sshll.u32 %s6, 4
      %s814 = int_to_ptr.hbm [resolvable:$true] %s813
      %816 = dma.vmem_to_hbm [thread:$0]  %s812, 16, %s814, [#allocation7]
    $region33: #{tpu_custom_call.1} parent=1 // pred_fallthru
      _
    // Predicated region
    $region34: #{tpu_custom_call.1} parent=1 // pred_check
      _
    $region35: #{tpu_custom_call.1} parent=1 // pred_check_branch
      %818 = sbr.rel (0) target = $region37
    $region36: #{tpu_custom_call.1} parent=1 // pred_region
      %820 = dma.done [#allocation4], 128
    $region37: #{tpu_custom_call.1} parent=1 // pred_fallthru
      _
    // Predicated region
    $region38: #{tpu_custom_call.1} parent=1 // pred_check
      _
    $region39: #{tpu_custom_call.1} parent=1 // pred_check_branch
      %822 = sbr.rel (0) target = $region41
    $region40: #{tpu_custom_call.1} parent=1 // pred_region
      %824 = dma.done [#allocation7], 16
    $region41: #{tpu_custom_call.1} parent=1 // pred_fallthru
      _
    %825 = vsyncpa [#allocation3], 1
    %826 = vsyncpa [#allocation4], 1
    %827 = vsyncpa [#allocation7], 1

</llo_original>
